<compile_context>
chip_gen: v7x
topology: tpu7x:2x2x1
jax: 0.10.0
libtpu: 0.0.40
codegen_flags: <defaults>
</compile_context>

<pallas_src>
import functools

import jax
import jax.numpy as jnp
from jax.experimental import pallas as pl
from jax.experimental.pallas import tpu as pltpu

_MiB = 1024 * 1024


def _npc_kernel(params_ref, x_ref, memt_ref, out_ref):
    """One (tm, tn) output tile: out = (x @ memory_t) / tau.

    params_ref: SMEM scalar-prefetch ref; params_ref[0] = tau.
    x_ref:      (tm, D)  tile of x
    memt_ref:   (D, tn)  tile of the transposed memory bank (resident across B)
    out_ref:    (tm, tn) output tile
    """
    inv_tau = 1.0 / params_ref[0]
    acc = jnp.dot(x_ref[...], memt_ref[...], preferred_element_type=jnp.float32)
    out_ref[...] = (acc * inv_tau).astype(out_ref.dtype)


def _tpu_vmem_and_cores():
    """Per-TensorCore VMEM capacity and TC count (generation-aware, safe fallback)."""
    vmem = 64 * _MiB  # conservative fallback = v7x per-TC capacity
    try:
        info = pltpu.get_tpu_info()
        v = int(getattr(info, "vmem_capacity_bytes", 0))
        if v > 0:
            vmem = v
    except Exception:
        pass
    # Heuristic: 64-MiB-per-TC chips (v7x) have 2 TensorCores sharing the grid.
    cores = 2 if vmem <= 80 * _MiB else 1
    return vmem, cores


def _pick_tiles(B, N, D, in_isz, out_isz, budget_bytes, num_cores):
    """Pick (tm, tn) so double-buffered blocks fit the generation-aware budget.

    Priority: tn (bank-slab width) first — each memory_t block should be
    multi-MB so per-grid-step overhead amortizes — then tm with what is left
    (full batch when possible).  Footprint model:
        2*(tm*D + D*tn)*in_isz + 2*tm*tn*out_isz  <=  budget_bytes
    """
    n_pad = ((N + 127) // 128) * 128

    # Give the (double-buffered) bank slab ~60% of the budget.
    tn = min(n_pad, (int(0.6 * budget_bytes) // (2 * D * in_isz)) // 128 * 128)
    tm = 0
    while tn >= 128:
        rem = budget_bytes - 2 * D * tn * in_isz
        per_row = 2 * D * in_isz + 2 * tn * out_isz
        tm_max = rem // per_row if rem > 0 else 0
        if tm_max >= B:
            tm = B          # full batch in one tile (legal full-extent block)
            break
        if tm_max >= 8:
            tm = (tm_max // 8) * 8
            break
        tn -= 128
    if tm == 0:             # pathological fallback: smallest legal tiles
        tm, tn = (B if B <= 8 else 8), (N if N <= 128 else 128)

    if tn >= n_pad:
        tn = N              # single full-extent lane-dense slab
    # v7x (2 TensorCores): keep >= 2 tiles along a parallel axis when the whole
    # problem would otherwise collapse onto one core.
    if num_cores >= 2 and tn >= N and tm >= B and N > 256:
        half = max(128, (((N + 1) // 2 + 127) // 128) * 128)
        if half < N:
            tn = half
    return tm, tn


@functools.partial(jax.jit, static_argnames=("tm", "tn", "out_dtype"))
def non_parametric_classifier_forward(x, memory_t, params, *, tm=None, tn=None,
                                      out_dtype=None):
    """out = (x @ memory_t) / tau   (== x.mm(memory.t()) / tau in PyTorch).

    x:        (B, D)
    memory_t: (D, N) -- memory bank stored transposed (transpose once at init).
              Persist it as bf16 in HBM to halve its streaming cost; it is used
              in whatever dtype it arrives in (no per-call cast of the bank).
    params:   (2,)   -- [tau, momentum]; only tau is used in the forward.
    out_dtype: output dtype (default f32; bf16 halves the output write for
               large-B configs feeding a softmax/NCE loss).
    """
    B, D = x.shape
    D2, N = memory_t.shape
    assert D == D2, "feature dims must match"

    # Only the tiny x tile is cast to match the (possibly bf16) bank dtype.
    if x.dtype != memory_t.dtype:
        x = x.astype(memory_t.dtype)
    out_dtype = jnp.float32 if out_dtype is None else out_dtype

    in_isz = jnp.dtype(x.dtype).itemsize
    out_isz = jnp.dtype(out_dtype).itemsize

    phys_vmem, num_cores = _tpu_vmem_and_cores()
    budget = int(phys_vmem * 0.72)     # ~46 MiB on v7x, ~92 MiB on v5e/v6e
    auto_tm, auto_tn = _pick_tiles(B, N, D, in_isz, out_isz, budget, num_cores)
    tm = auto_tm if tm is None else tm
    tn = auto_tn if tn is None else tn

    grid_n = pl.cdiv(N, tn)
    grid_b = pl.cdiv(B, tm)
    # N-tiles OUTER, B-tiles INNER: memory_t's block index depends only on the
    # outer axis, so the bank block stays resident across the inner B loop and
    # the bank is streamed from HBM exactly once.
    grid = (grid_n, grid_b)

    need = 2 * (tm * D + D * tn) * in_isz + 2 * tm * tn * out_isz
    vmem_limit = int(min(phys_vmem * 0.9, max(need + 8 * _MiB, 32 * _MiB)))

    cost = pl.CostEstimate(
        flops=2 * B * N * D,
        transcendentals=0,
        bytes_accessed=(grid_n * B * D * in_isz   # tiny x re-read per N tile
                        + N * D * in_isz          # bank streamed exactly once
                        + B * N * out_isz),
    )

    return pl.pallas_call(
        _npc_kernel,
        out_shape=jax.ShapeDtypeStruct((B, N), out_dtype),
        grid_spec=pltpu.PrefetchScalarGridSpec(
            num_scalar_prefetch=1,  # params -> SMEM, read as params_ref[0]
            grid=grid,
            in_specs=[
                pl.BlockSpec((tm, D), lambda j, i, params: (i, 0)),
                pl.BlockSpec((D, tn), lambda j, i, params: (0, j)),  # outer only
            ],
            out_specs=pl.BlockSpec((tm, tn), lambda j, i, params: (i, j)),
        ),
        compiler_params=pltpu.CompilerParams(
            dimension_semantics=("parallel", "parallel"),
            vmem_limit_bytes=vmem_limit,
        ),
        cost_estimate=cost,
    )(params, x, memory_t)


def init_memory(key, output_dim, input_dim):
    """Deterministic replica of the PyTorch buffer init:
    torch.rand(N, D) * (2*stdv) - stdv  with stdv = 1/sqrt(D/3)."""
    stdv = 1.0 / (input_dim / 3.0) ** 0.5
    u = jax.random.uniform(key, (output_dim, input_dim), dtype=jnp.float32)
    return u * (2.0 * stdv) - stdv


if __name__ == "__main__":
    # Small shapes consistent with the module: B=8 samples, input_dim=32,
    # output_dim=128 "classes" (one memory row per training instance).
    B, input_dim, output_dim = 8, 32, 128
    tau, momentum = 1.0, 0.5

    key = jax.random.PRNGKey(0)
    kx, kmem = jax.random.split(key)

    x = jax.random.normal(kx, (B, input_dim), dtype=jnp.float32)
    memory = init_memory(kmem, output_dim, input_dim)   # PyTorch layout (N, D)
    memory_t = memory.T                                  # transpose ONCE at init -> (D, N)
    params = jnp.array([tau, momentum], dtype=jnp.float32)

    # NOTE: `y` is only consumed by the PyTorch backward (memory-bank momentum
    # update); the forward ignores it, so the kernel takes no `y` argument.
    # TODO(synk): backward-pass memory-bank index_copy_/momentum update is
    # training-only state mutation and is not part of this forward kernel.

    out = non_parametric_classifier_forward(x, memory_t, params)
    out = jax.block_until_ready(out)

    ref = (x @ memory.T) / tau
    assert out.shape == (B, output_dim)
    assert out.dtype == jnp.float32
    assert jnp.allclose(out, ref, atol=1e-5, rtol=1e-5)

    # bf16 bank persisted in HBM (cast ONCE here, not per call): halves the
    # dominant HBM stream; MXU still accumulates in f32; output stays f32.
    memory_t_bf16 = memory_t.astype(jnp.bfloat16)
    out_bf16bank = non_parametric_classifier_forward(x, memory_t_bf16, params)
    out_bf16bank = jax.block_until_ready(out_bf16bank)
    assert out_bf16bank.dtype == jnp.float32
    assert jnp.allclose(out_bf16bank, ref, atol=5e-2, rtol=5e-2)

    # bf16 output option (for softmax/NCE consumers where the B*N write dominates).
    out_bf16 = non_parametric_classifier_forward(x, memory_t, params,
                                                 out_dtype=jnp.bfloat16)
    out_bf16 = jax.block_until_ready(out_bf16)
    assert out_bf16.dtype == jnp.bfloat16
    assert jnp.allclose(out_bf16.astype(jnp.float32), ref, atol=5e-2, rtol=5e-2)

    print("KERNEL_OK")
</pallas_src>

<mosaic_0001>
module attributes {stable_mosaic.version = 11 : i64} {
  func.func @_npc_kernel(%arg0: i32, %arg1: i32, %arg2: memref<2xf32, #tpu.memory_space<smem>>, %arg3: memref<8x32xf32, #tpu.memory_space<vmem>>, %arg4: memref<32x128xf32, #tpu.memory_space<vmem>>, %arg5: memref<8x128xf32, #tpu.memory_space<vmem>>) attributes {dimension_semantics = [#tpu.dimension_semantics<parallel>, #tpu.dimension_semantics<parallel>], iteration_bounds = array<i64: 1, 1>, scalar_prefetch = 1 : i64, scratch_operands = 0 : i64, tpu.core_type = #tpu.core_type<tc>, window_params = [{transform_indices = @transform_0, window_bounds = array<i64: 8, 32>}, {transform_indices = @transform_1, window_bounds = array<i64: 32, 128>}, {transform_indices = @transform_2, window_bounds = array<i64: 8, 128>}]} {
    %c0 = arith.constant 0 : index
    %0 = memref.load %arg2[%c0] : memref<2xf32, #tpu.memory_space<smem>>
    %cst = arith.constant 1.000000e+00 : f32
    %1 = arith.divf %cst, %0 : f32
    %c0_0 = arith.constant 0 : index
    %c0_1 = arith.constant 0 : index
    %2 = vector.load %arg3[%c0_0, %c0_1] : memref<8x32xf32, #tpu.memory_space<vmem>>, vector<8x32xf32>
    %c0_2 = arith.constant 0 : index
    %c0_3 = arith.constant 0 : index
    %3 = vector.load %arg4[%c0_2, %c0_3] : memref<32x128xf32, #tpu.memory_space<vmem>>, vector<32x128xf32>
    %cst_4 = arith.constant dense<0.000000e+00> : vector<8x128xf32>
    %4 = tpu.matmul %2, %3, %cst_4 {dimension_numbers = #tpu.dot_dimension_numbers<[1], [0], [0], [1], [0, 0, 1, 1], [], []>} : vector<8x32xf32>, vector<32x128xf32>, vector<8x128xf32> -> vector<8x128xf32>
    %5 = vector.broadcast %1 : f32 to vector<8x128xf32>
    %6 = arith.mulf %4, %5 : vector<8x128xf32>
    %c0_5 = arith.constant 0 : index
    %c0_6 = arith.constant 0 : index
    %7 = vector.load %arg5[%c0_5, %c0_6] : memref<8x128xf32, #tpu.memory_space<vmem>>, vector<8x128xf32>
    tpu.vector_store %arg5[%c0_5, %c0_6], %6 {strides = array<i32>} : memref<8x128xf32, #tpu.memory_space<vmem>>, vector<8x128xf32>,
    return
  }
  func.func @transform_0(%arg0: i32, %arg1: i32, %arg2: memref<2xf32, #tpu.memory_space<smem>>) -> (i32, i32) {
    %c0_i32 = arith.constant 0 : i32
    %c0_i32_0 = arith.constant 0 : i32
    return %arg1, %c0_i32 : i32, i32
  }
  func.func @transform_1(%arg0: i32, %arg1: i32, %arg2: memref<2xf32, #tpu.memory_space<smem>>) -> (i32, i32) {
    %c0_i32 = arith.constant 0 : i32
    %c0_i32_0 = arith.constant 0 : i32
    return %c0_i32, %arg0 : i32, i32
  }
  func.func @transform_2(%arg0: i32, %arg1: i32, %arg2: memref<2xf32, #tpu.memory_space<smem>>) -> (i32, i32) {
    %c0_i32 = arith.constant 0 : i32
    return %arg1, %arg0 : i32, i32
  }
}

</mosaic_0001>

<llo_original>
// kernel: non_parametric_classifier_forward.1
$region0: #{non_parametric_classifier_forward.1}
  #allocation0 [shape = 'u32[]', space=smem, size = 0x4, offset = 0x4, fixed_abs, tag = 'smem constant byte address 0x4 - core index']
  #allocation1 [shape = 'u32[144,128]{1,0:T(1,128)}', space=vmem, size = 0x12000, scoped, tag = 'internal scratch']
  #allocation2 [shape = 's32[1]{0}', space=sflag, size = 0x4, scoped, tag = 'scoped memory for non_parametric_classifier_forward.1']
  #allocation3 [shape = 'u8[512]{0}', space=smem, size = 0x200, scoped, tag = 'prefetched SMEM operand 0']
  %s0 = inlined_call_operand.vmem [shape: f32[2], index: 0, kind: input, shape index: {}]
  %s1 = inlined_call_operand.hbm [shape: f32[8,32], index: 1, kind: input, shape index: {}]
  %s2 = inlined_call_operand.hbm [shape: f32[32,128], index: 2, kind: input, shape index: {}]
  %s3 = inlined_call_operand.hbm [shape: f32[8,128], index: 3, kind: output, shape index: {}]
  %s4 = sld [smem:[#allocation0]]
  $region26: #{non_parametric_classifier_forward.1} parent=0
    _
  %s6 = ssub.s32 1, %s4
  %s7 = scalar_select 0, %s6, %s4
  %s8 = sshll.u32 %s0, 4
  %s9 = int_to_ptr.vmem [resolvable:$true] %s8
  %11 = dma.vmem_to_smem %s9, 16, [#allocation3], [#allocation2]
  %12 = dma.done [#allocation2], 16
  %13 = sfence
  $region1: #{non_parametric_classifier_forward.1} parent=0
    #allocation4 [shape = 'u8[4096]{0}', space=vmem, size = 0x1000, scoped, tag = 'input window, operand 1, single buffered']
    #allocation5 [shape = 's32[1]{0}', space=sflag, size = 0x4, scoped, tag = 'scoped memory for non_parametric_classifier_forward.1']
    #allocation6 [shape = 's32[1]{0}', space=sflag, size = 0x4, scoped, tag = 'scoped memory for non_parametric_classifier_forward.1']
    #allocation7 [shape = 'u8[16384]{0}', space=vmem, size = 0x4000, scoped, tag = 'input window, operand 2, single buffered']
    #allocation8 [shape = 's32[1]{0}', space=sflag, size = 0x4, scoped, tag = 'scoped memory for non_parametric_classifier_forward.1']
    #allocation9 [shape = 'u8[4096]{0}', space=vmem, size = 0x1000, scoped, tag = 'output window, operand 0, single buffered']
    %14 = vsyncpa [#allocation5], 0
    %15 = vsyncpa [#allocation8], 0
    %16 = vsyncpa [#allocation6], 0
    // Predicated region
    $region2: #{non_parametric_classifier_forward.1} parent=1 // pred_check
      _
    $region3: #{non_parametric_classifier_forward.1} parent=1 // pred_check_branch
      %18 = sbr.rel (0) target = $region5
    $region4: #{non_parametric_classifier_forward.1} parent=1 // pred_region
      %s20 = ssub.s32 128, 128
      %21 = vsyncadd [#allocation5], %s20
      %s23 = sshll.u32 [#allocation4], 4
      %s24 = int_to_ptr.vmem [resolvable:$true] %s23
      %26 = dma.hbm_to_vmem [thread:$0]  %s1, 128, %s24, [#allocation5]
    $region5: #{non_parametric_classifier_forward.1} parent=1 // pred_fallthru
      _
    // Predicated region
    $region6: #{non_parametric_classifier_forward.1} parent=1 // pred_check
      _
    $region7: #{non_parametric_classifier_forward.1} parent=1 // pred_check_branch
      %28 = sbr.rel (0) target = $region9
    $region8: #{non_parametric_classifier_forward.1} parent=1 // pred_region
      %s30 = ssub.s32 512, 512
      %31 = vsyncadd [#allocation8], %s30
      %s32 = sshll.u32 [#allocation7], 4
      %s33 = int_to_ptr.vmem [resolvable:$true] %s32
      %38 = dma.hbm_to_vmem [thread:$0]  %s2, 512, %s33, [#allocation8], 128, 128, 8
    $region9: #{non_parametric_classifier_forward.1} parent=1 // pred_fallthru
      _
    // Predicated region
    $region10: #{non_parametric_classifier_forward.1} parent=1 // pred_check
      _
    $region11: #{non_parametric_classifier_forward.1} parent=1 // pred_check_branch
      %40 = sbr.rel (0) target = $region13
    $region12: #{non_parametric_classifier_forward.1} parent=1 // pred_region
      %41 = dma.done [#allocation5], 128
    $region13: #{non_parametric_classifier_forward.1} parent=1 // pred_fallthru
      _
    // Predicated region
    $region14: #{non_parametric_classifier_forward.1} parent=1 // pred_check
      _
    $region15: #{non_parametric_classifier_forward.1} parent=1 // pred_check_branch
      %43 = sbr.rel (0) target = $region17
    $region16: #{non_parametric_classifier_forward.1} parent=1 // pred_region
      %44 = dma.done [#allocation8], 512
    $region17: #{non_parametric_classifier_forward.1} parent=1 // pred_fallthru
      _
    %s45 = sld [smem:[#allocation3]]
    %v46 = vstv %s45
    %v47 = vrcp.pop %v46
    %s48 = vtos %v47
    %v49 = vld [vmem:[#allocation4] sm:$0xff]
    %v50 = vld [vmem:[#allocation7] sm:$0xff]
    %v51 = vld [vmem:[#allocation7 + $0x8] sm:$0xff]
    %v52 = vld [vmem:[#allocation7 + $0x10] sm:$0xff]
    %v53 = vld [vmem:[#allocation7 + $0x18] sm:$0xff]
    %vm54 = vcmask 261120
    %v56 = vsel %vm54, %v49, 0
    %58 = vmatprep.subr.mxu0 0.0
    %59 = vmatpush1.msra.mxu0 %v50
    %60 = vmatprep.subr.mxu0 0.0
    %61 = vmatpush1.msra.mxu0 %v51
    %62 = vmatprep.subr.mxu0 0.0
    %63 = vmatpush1.msra.mxu0 %v52
    %64 = vmatprep.subr.mxu0 0.0
    %65 = vmatpush1.msra.mxu0 %v53
    %66 = vmatprep.subr.mxu0 0.0
    %67 = vmatpush1.msra.mxu0 0.0
    %68 = vmatprep.subr.mxu0 0.0
    %69 = vmatpush1.msra.mxu0 0.0
    %70 = vmatprep.subr.mxu0 0.0
    %71 = vmatpush1.msra.mxu0 0.0
    %72 = vmatprep.subr.mxu0 0.0
    %73 = vmatpush1.msra.mxu0 0.0
    %74 = vmatprep.subr.mxu0 0.0
    %75 = vmatpush1.msra.mxu0 0.0
    %76 = vmatprep.subr.mxu0 0.0
    %77 = vmatpush1.msra.mxu0 0.0
    %78 = vmatprep.subr.mxu0 0.0
    %79 = vmatpush1.msra.mxu0 0.0
    %80 = vmatprep.subr.mxu0 0.0
    %81 = vmatpush1.msra.mxu0 0.0
    %82 = vmatprep.subr.mxu0 0.0
    %83 = vmatpush1.msra.mxu0 0.0
    %84 = vmatprep.subr.mxu0 0.0
    %85 = vmatpush1.msra.mxu0 0.0
    %86 = vmatprep.subr.mxu0 0.0
    %87 = vmatpush1.msra.mxu0 0.0
    %88 = vmatprep.subr.mxu0 0.0
    %89 = vmatpush1.msra.mxu0 0.0
    %90 = vmatprep.subr.mxu0 0.0
    %91 = vmatpush1.msra.mxu0 0.0
    %92 = vmatprep.subr.mxu0 0.0
    %93 = vmatpush1.msra.mxu0 0.0
    %94 = vmatprep.subr.mxu0 0.0
    %95 = vmatpush1.msra.mxu0 0.0
    %96 = vmatprep.subr.mxu0 0.0
    %97 = vmatpush1.msra.mxu0 0.0
    %98 = vmatprep.subr.mxu0 0.0
    %99 = vmatpush1.msra.mxu0 0.0
    %100 = vmatprep.subr.mxu0 0.0
    %101 = vmatpush1.msra.mxu0 0.0
    %102 = vmatprep.subr.mxu0 0.0
    %103 = vmatpush1.msra.mxu0 0.0
    %104 = vmatprep.subr.mxu0 0.0
    %105 = vmatpush1.msra.mxu0 0.0
    %106 = vmatprep.subr.mxu0 0.0
    %107 = vmatpush1.msra.mxu0 0.0
    %108 = vmatprep.subr.mxu0 0.0
    %109 = vmatpush1.msra.mxu0 0.0
    %110 = vmatprep.subr.mxu0 0.0
    %111 = vmatpush1.msra.mxu0 0.0
    %112 = vmatprep.subr.mxu0 0.0
    %113 = vmatpush1.msra.mxu0 0.0
    %114 = vmatprep.subr.mxu0 0.0
    %115 = vmatpush1.msra.mxu0 0.0
    %116 = vmatprep.subr.mxu0 0.0
    %117 = vmatpush1.msra.mxu0 0.0
    %118 = vmatprep.subr.mxu0 0.0
    %119 = vmatpush1.msra.mxu0 0.0
    %120 = vmatprep.subr.mxu0 0.0
    %121 = vmatpush1.msra.mxu0 0.0
    %122 = vmatprep.mubr.f32.mxu0 0.0
    %123 = vmatmul.mubr.f32.gmra.mrb[0].mxu0 %v56
    %v124 = vpop.f32.mrb[0].mxu0
    %v125 = vadd.f32 0.0, %v124
    %v126 = vpop.f32.mrb[0].mxu0
    %127 = vdwg.mxu0
    %v128 = vstv %s48
    %v129 = vmul.f32 %v125, %v128
    %130 = vst [vmem:[#allocation9] sm:$0xff] %v129
    // Predicated region
    $region18: #{non_parametric_classifier_forward.1} parent=1 // pred_check
      _
    $region19: #{non_parametric_classifier_forward.1} parent=1 // pred_check_branch
      %132 = sbr.rel (0) target = $region21
    $region20: #{non_parametric_classifier_forward.1} parent=1 // pred_region
      %s134 = ssub.s32 128, 128
      %135 = vsyncadd [#allocation6], %s134
      %s137 = sshll.u32 [#allocation9], 4
      %s138 = int_to_ptr.vmem [resolvable:$true] %s137
      %140 = dma.vmem_to_hbm [thread:$0]  %s138, 128, %s3, [#allocation6]
    $region21: #{non_parametric_classifier_forward.1} parent=1 // pred_fallthru
      _
    // Predicated region
    $region22: #{non_parametric_classifier_forward.1} parent=1 // pred_check
      _
    $region23: #{non_parametric_classifier_forward.1} parent=1 // pred_check_branch
      %142 = sbr.rel (0) target = $region25
    $region24: #{non_parametric_classifier_forward.1} parent=1 // pred_region
      %143 = dma.done [#allocation6], 128
    $region25: #{non_parametric_classifier_forward.1} parent=1 // pred_fallthru
      _
    %144 = vsyncpa [#allocation5], 1
    %145 = vsyncpa [#allocation8], 1
    %146 = vsyncpa [#allocation6], 1

</llo_original>
